<compile_context>
chip_gen: v5e
topology: v5e:2x2
jax: 0.10.0
libtpu: 0.0.40
codegen_flags: <defaults>
</compile_context>

<pallas_src>
import numpy as np
import jax
import jax.numpy as jnp
from jax.experimental import pallas as pl
from jax.experimental.pallas import tpu as pltpu

LANE = 128   # TPU lane width; every feature dim is padded to this
SUB = 8      # sublane group


def _round_up(x, m):
    return ((x + m - 1) // m) * m


def _decoder_step_kernel(
    word_ref,    # (NP, 1)  int32  token ids for this decode step (padded rows -> 0)
    h0_ref,      # (NP, P)  f32    initial hidden state (read at grid step 0 only)
    enc_ref,     # (NP*(T+1), 2P) f32  per-sequence pack (resident across steps):
                 #   rows [0:NP*T]  lanes [0:P]        proj_e + b_attn
                 #   rows [0:NP*T]  lanes [P+E:P+E+C]  encoder memory (shifted by E lanes)
                 #   rows [NP*T:]   lanes [0:T]        additive score bias (0 / -1e10)
    emb_ref,     # (VocP, P)       padded embedding table (resident)
    wgru_ref,    # (2P, 3P)        rows [0:P]=W_ih for the single [embed|ctx] lane block,
                 #                 rows [P:2P]=W_hh; gate g in cols [g*P:g*P+H]
    wmisc_ref,   # (2P+8, P)       rows [0:P]=W_attn(dec), rows [P:2P]=W_cls,
                 #                 rows [2P:2P+8]=[v_attn, b_ih(r,z,n), b_hh(r,z,n), b_cls]
    out_ref,     # (1, NP, 3P) f32 out: [logits | h_new | attn weights (T lanes, zero pad)]
    h_scr,       # (NP, P) f32 VMEM scratch: hidden state carried across grid steps
):
    P = LANE
    NP = h0_ref.shape[0]
    T = enc_ref.shape[0] // NP - 1
    VocP = emb_ref.shape[0]
    wdt = wgru_ref.dtype

    s = pl.program_id(0)

    @pl.when(s == 0)
    def _():
        h_scr[...] = h0_ref[...]

    h = h_scr[...]                                            # (NP, P) f32

    # ---- embedding lookup: one-hot MXU gather (no wrapper-side jnp.take) ----
    ids = word_ref[...]                                       # (NP, 1) int32
    iota = jax.lax.broadcasted_iota(jnp.int32, (NP, VocP), 1)
    onehot = (iota == ids).astype(wdt)                        # (NP, VocP)
    embed = jnp.dot(onehot, emb_ref[...],
                    preferred_element_type=jnp.float32)       # (NP, P), real lanes [0:E]

    # ---- Bahdanau attention (encoder projection + b_attn precomputed) ------
    wah = wmisc_ref[0:P, :]
    b = wmisc_ref[2 * P:2 * P + 8, :].astype(jnp.float32)     # (8, P) bias rows
    v_attn = b[0:1, :]

    proj_h = jnp.dot(h.astype(wdt), wah,
                     preferred_element_type=jnp.float32)      # (NP, P)
    proj_e = enc_ref[0:NP * T, 0:P].reshape(NP, T, P)         # proj_e + b_attn
    enc_sh = enc_ref[0:NP * T, P:2 * P].reshape(NP, T, P)     # enc mem in lanes [E:E+C]
    tail = enc_ref[NP * T:NP * (T + 1), 0:P]                  # (NP, P)
    sbias = tail[:, 0:T]                                      # (NP, T) 0 / -1e10

    attn_hidden = jnp.tanh(proj_e + proj_h[:, None, :])       # (NP, T, P)
    score = jnp.sum(attn_hidden * v_attn.reshape(1, 1, P), axis=-1) + sbias  # (NP, T)
    m = jnp.max(score, axis=-1, keepdims=True)
    e = jnp.exp(score - m)
    weights = e / jnp.sum(e, axis=-1, keepdims=True)          # (NP, T)

    # T is tiny (8): the T-contraction stays on the VPU/XLU.  ctx lands in lanes [E:E+C].
    ctx = jnp.sum(weights[:, :, None] * enc_sh, axis=1)       # (NP, P)

    # ---- single-step GRU (input matmul fused over ONE 128-lane block) ------
    rnn_in = embed + ctx                                      # embed @ [0:E], ctx @ [E:E+C]
    wih = wgru_ref[0:P, :]
    whh = wgru_ref[P:2 * P, :]
    gi = jnp.dot(rnn_in.astype(wdt), wih, preferred_element_type=jnp.float32)  # (NP, 3P)
    gh = jnp.dot(h.astype(wdt), whh, preferred_element_type=jnp.float32)       # (NP, 3P)

    # gate blocks are 128-lane aligned -> plain vreg selection, no XLU slicing
    r = jax.nn.sigmoid(gi[:, 0:P] + b[1:2, :] + gh[:, 0:P] + b[4:5, :])
    z = jax.nn.sigmoid(gi[:, P:2 * P] + b[2:3, :] + gh[:, P:2 * P] + b[5:6, :])
    n = jnp.tanh(gi[:, 2 * P:3 * P] + b[3:4, :] + r * (gh[:, 2 * P:3 * P] + b[6:7, :]))
    h_new = (1.0 - z) * n + z * h                             # (NP, P)

    # ---- classifier (V padded to 128 lanes) ---------------------------------
    wcls = wmisc_ref[P:2 * P, :]
    logits = jnp.dot(h_new.astype(wdt), wcls,
                     preferred_element_type=jnp.float32) + b[7:8, :]

    h_scr[...] = h_new

    # single lane-dense (NP, 3*128) store: no masked partial stores
    w_pad = jnp.concatenate([weights, jnp.zeros((NP, P - T), jnp.float32)], axis=-1)
    out_ref[0] = jnp.concatenate([logits, h_new, w_pad], axis=-1)


def pack_decoder_params(params, matmul_dtype=jnp.float32):
    """Pack/pad all weights ONCE (amortized over decode steps / sequences).

    On v6e/v7x pass matmul_dtype=jnp.bfloat16: native MXU path + half the
    weight DMA; transcendental math in the kernel stays f32 (v5e-friendly).
    """
    P = LANE
    E = params["emb"].shape[1]
    H = params["w_hh"].shape[0]
    C = params["w_attn"].shape[0] - H
    A = params["w_attn"].shape[1]
    V = params["w_cls"].shape[1]
    vocab = params["emb"].shape[0]
    # TODO(synk): tile over a grid once any of these exceeds one 128-lane block.
    assert max(E, H, A, V) <= P and E + C <= P

    VocP = _round_up(vocab, P)
    emb_p = jnp.zeros((VocP, P), jnp.float32)
    emb_p = emb_p.at[:vocab, :E].set(params["emb"].astype(jnp.float32))

    # GRU: rnn input is one 128-lane block [embed | ctx] -> W_ih uses rows [0:E+C]
    w_gru_p = jnp.zeros((2 * P, 3 * P), jnp.float32)
    for g in range(3):
        w_gru_p = w_gru_p.at[:E + C, g * P:g * P + H].set(
            params["w_ih"][:, g * H:(g + 1) * H].astype(jnp.float32))
        w_gru_p = w_gru_p.at[P:P + H, g * P:g * P + H].set(
            params["w_hh"][:, g * H:(g + 1) * H].astype(jnp.float32))

    # misc slab: attention (decoder half), classifier, all biases
    w_misc_p = jnp.zeros((2 * P + 8, P), jnp.float32)
    w_misc_p = w_misc_p.at[:H, :A].set(params["w_attn"][:H].astype(jnp.float32))
    w_misc_p = w_misc_p.at[P:P + H, :V].set(params["w_cls"].astype(jnp.float32))
    w_misc_p = w_misc_p.at[2 * P + 0, :A].set(params["v_attn"].astype(jnp.float32))
    for g in range(3):
        w_misc_p = w_misc_p.at[2 * P + 1 + g, :H].set(
            params["b_ih"][g * H:(g + 1) * H].astype(jnp.float32))
        w_misc_p = w_misc_p.at[2 * P + 4 + g, :H].set(
            params["b_hh"][g * H:(g + 1) * H].astype(jnp.float32))
    w_misc_p = w_misc_p.at[2 * P + 7, :V].set(params["b_cls"].astype(jnp.float32))

    return {
        "emb_p": emb_p.astype(matmul_dtype),
        "w_gru_p": w_gru_p.astype(matmul_dtype),
        "w_misc_p": w_misc_p.astype(matmul_dtype),
        # encoder half of W_attn + b_attn are only needed at sequence-prepare time:
        "w_attn_enc": params["w_attn"][H:].astype(jnp.float32),
        "b_attn": params["b_attn"].astype(jnp.float32),
        "dims": dict(E=E, H=H, C=C, A=A, V=V, vocab=vocab, VocP=VocP),
    }


def prepare_encoder_memory(packed, enc_mem, enc_mem_lens):
    """Per-sequence, step-invariant work: encoder projection (+b_attn), shifted
    encoder memory and the additive attention-mask bias, packed into ONE slab."""
    P = LANE
    d = packed["dims"]
    E, C, A = d["E"], d["C"], d["A"]
    N, T, Cin = enc_mem.shape
    assert Cin == C
    assert T % SUB == 0, "pad T to a multiple of 8 for a free (NP,T,128) reshape"
    NP = _round_up(max(N, SUB), SUB)

    enc = enc_mem.astype(jnp.float32).reshape(N * T, C)
    proj_e = enc @ packed["w_attn_enc"] + packed["b_attn"]            # (N*T, A)

    enc_pack = jnp.zeros((NP * (T + 1), 2 * P), jnp.float32)
    enc_pack = enc_pack.at[:N * T, :A].set(proj_e)
    enc_pack = enc_pack.at[:N * T, P + E:P + E + C].set(enc)          # shifted by E lanes
    sbias = jnp.where(
        jnp.arange(T, dtype=jnp.int32)[None, :] < enc_mem_lens.astype(jnp.int32)[:, None],
        0.0, -1e10).astype(jnp.float32)                               # (N, T)
    enc_pack = enc_pack.at[NP * T:NP * T + N, :T].set(sbias)
    return {"enc_pack": enc_pack, "N": N, "NP": NP, "T": T}


def _run_decoder_kernel(packed, enc_prep, word_ids, h0):
    """Run S decode steps in ONE pallas_call.  word_ids: (S, N) int32, h0: (N, H)."""
    P = LANE
    d = packed["dims"]
    H = d["H"]
    N, NP, T = enc_prep["N"], enc_prep["NP"], enc_prep["T"]
    S = word_ids.shape[0]

    ids_p = jnp.zeros((S, NP), jnp.int32).at[:, :N].set(word_ids.astype(jnp.int32))
    ids_p = ids_p.reshape(S * NP, 1)
    h0_p = jnp.zeros((NP, P), jnp.float32).at[:N, :H].set(h0.astype(jnp.float32))

    vmem = pl.BlockSpec(memory_space=pltpu.MemorySpace.VMEM)
    grid_spec = pltpu.PrefetchScalarGridSpec(
        num_scalar_prefetch=0,
        grid=(S,),
        in_specs=[
            pl.BlockSpec((NP, 1), lambda s: (s, 0)),   # per-step token ids
            vmem,                                       # h0           (resident)
            vmem,                                       # enc_pack     (resident)
            vmem,                                       # embedding    (resident)
            vmem,                                       # GRU weights  (resident)
            vmem,                                       # attn/cls/bias(resident)
        ],
        out_specs=pl.BlockSpec((1, NP, 3 * P), lambda s: (s, 0, 0)),
        scratch_shapes=[pltpu.VMEM((NP, P), jnp.float32)],   # carried hidden state
    )
    out = pl.pallas_call(
        _decoder_step_kernel,
        out_shape=jax.ShapeDtypeStruct((S, NP, 3 * P), jnp.float32),
        grid_spec=grid_spec,
        compiler_params=pltpu.CompilerParams(
            dimension_semantics=("arbitrary",)),   # h carried across steps -> sequential
    )(ids_p, h0_p, enc_prep["enc_pack"],
      packed["emb_p"], packed["w_gru_p"], packed["w_misc_p"])
    return out


def rnn_bahdanau_attn_decoder(packed, word, state, enc_mem=None, enc_mem_lens=None,
                              enc_prep=None):
    """One decode step (matches RNNBahdanauAttnDecoder.forward; dropout p=0)."""
    P = LANE
    d = packed["dims"]
    H, V = d["H"], d["V"]
    if enc_prep is None:
        enc_prep = prepare_encoder_memory(packed, enc_mem, enc_mem_lens)
    N, T = enc_prep["N"], enc_prep["T"]

    out = _run_decoder_kernel(packed, enc_prep, word[:, 0][None, :], state[0])
    slab = out[0]                                   # (NP, 3P)
    logits = slab[:N, 0:V]
    h_new = slab[:N, P:P + H]
    attn_w = slab[:N, 2 * P:2 * P + T]
    return {
        "states": h_new[None],            # (1, N, H)
        "output": h_new[:, None, :],      # (N, 1, H)
        "logits": logits[:, None, :],     # (N, 1, V)
        "weights": attn_w,                # (N, T)
    }


def rnn_bahdanau_attn_decoder_fused(packed, words, state0, enc_mem, enc_mem_lens):
    """Fused decode loop: all S steps in ONE pallas_call (per-step semantics identical
    to the module's forward; token ids are provided externally, e.g. teacher forcing)."""
    P = LANE
    d = packed["dims"]
    H, V = d["H"], d["V"]
    enc_prep = prepare_encoder_memory(packed, enc_mem, enc_mem_lens)
    N, T = enc_prep["N"], enc_prep["T"]
    S = words.shape[0]

    slab = _run_decoder_kernel(packed, enc_prep, words, state0[0])    # (S, NP, 3P)
    logits = slab[:, :N, 0:V].transpose(1, 0, 2)                      # (N, S, V)
    hidden = slab[:, :N, P:P + H].transpose(1, 0, 2)                  # (N, S, H)
    attn_w = slab[:, :N, 2 * P:2 * P + T].transpose(1, 0, 2)          # (N, S, T)
    return {
        "states": slab[S - 1, :N, P:P + H][None],   # final hidden state (1, N, H)
        "output": hidden,
        "logits": logits,
        "weights": attn_w,
    }


def _reference(params, word, state, enc_mem, enc_mem_lens):
    """Pure-JAX reference matching the PyTorch forward semantics."""
    N, T, C = enc_mem.shape
    H = state.shape[-1]
    embed = params["emb"][word[:, 0]]
    h = state[0]
    h_rep = jnp.repeat(h[:, None, :], T, axis=1)
    attn_in = jnp.concatenate([h_rep, enc_mem], axis=-1)
    attn_out = jnp.tanh(attn_in @ params["w_attn"] + params["b_attn"])
    score = jnp.einsum("nta,a->nt", attn_out, params["v_attn"])
    mask = jnp.arange(T)[None, :] < enc_mem_lens[:, None]
    score = jnp.where(mask, score, -1e10)
    weights = jax.nn.softmax(score, axis=-1)
    ctx = jnp.einsum("nt,ntc->nc", weights, enc_mem)
    x = jnp.concatenate([embed, ctx], axis=-1)
    gi = x @ params["w_ih"] + params["b_ih"]
    gh = h @ params["w_hh"] + params["b_hh"]
    r = jax.nn.sigmoid(gi[:, :H] + gh[:, :H])
    z = jax.nn.sigmoid(gi[:, H:2 * H] + gh[:, H:2 * H])
    n = jnp.tanh(gi[:, 2 * H:] + r * gh[:, 2 * H:])
    h_new = (1.0 - z) * n + z * h
    logits = h_new @ params["w_cls"] + params["b_cls"]
    return logits, h_new, weights


def init_params(key, vocab_size, embed_size, enc_mem_size, hidden_size, attn_size):
    ks = jax.random.split(key, 10)

    def u(k, shape, fan_in):
        bound = 1.0 / np.sqrt(fan_in)
        return jax.random.uniform(k, shape, jnp.float32, -bound, bound)

    return {
        "emb":    u(ks[0], (vocab_size, embed_size), embed_size),
        "w_attn": u(ks[1], (hidden_size + enc_mem_size, attn_size), hidden_size + enc_mem_size),
        "b_attn": u(ks[2], (attn_size,), hidden_size + enc_mem_size),
        "v_attn": jax.random.normal(ks[3], (attn_size,), jnp.float32),
        "w_ih":   u(ks[4], (embed_size + enc_mem_size, 3 * hidden_size), hidden_size),
        "w_hh":   u(ks[5], (hidden_size, 3 * hidden_size), hidden_size),
        "b_ih":   u(ks[6], (3 * hidden_size,), hidden_size),
        "b_hh":   u(ks[7], (3 * hidden_size,), hidden_size),
        "w_cls":  u(ks[8], (hidden_size, vocab_size), hidden_size),
        "b_cls":  u(ks[9], (vocab_size,), hidden_size),
    }


if __name__ == "__main__":
    vocab_size, embed_size, enc_mem_size = 50, 32, 24
    hidden_size, attn_size = 32, 32
    N, T, S = 2, 8, 4   # T multiple of 8 (sublane) for clean in-kernel reshapes

    key = jax.random.PRNGKey(0)
    kp, kw, ks, ke = jax.random.split(key, 4)

    params = init_params(kp, vocab_size, embed_size, enc_mem_size, hidden_size, attn_size)
    packed = pack_decoder_params(params)               # packed once (amortized)

    word = jax.random.randint(kw, (N, 1), 0, vocab_size, dtype=jnp.int32)
    state = jax.random.normal(ks, (1, N, hidden_size), jnp.float32)
    enc_mem = jax.random.normal(ke, (N, T, enc_mem_size), jnp.float32)
    enc_mem_lens = jnp.array([T, 5], dtype=jnp.int32)

    # per-sequence prep (step-invariant encoder projection + mask), done once
    enc_prep = prepare_encoder_memory(packed, enc_mem, enc_mem_lens)

    # ---- single decode step (module-faithful forward) ----------------------
    out = rnn_bahdanau_attn_decoder(packed, word, state, enc_prep=enc_prep)
    jax.block_until_ready(out)

    ref_logits, ref_h, ref_w = _reference(params, word, state, enc_mem, enc_mem_lens)
    np.testing.assert_allclose(np.asarray(out["logits"][:, 0, :]), np.asarray(ref_logits),
                               rtol=1e-4, atol=1e-4)
    np.testing.assert_allclose(np.asarray(out["states"][0]), np.asarray(ref_h),
                               rtol=1e-4, atol=1e-4)
    np.testing.assert_allclose(np.asarray(out["weights"]), np.asarray(ref_w),
                               rtol=1e-4, atol=1e-4)

    # ---- fused multi-step decode loop (one pallas_call for S steps) --------
    words_seq = jax.random.randint(jax.random.PRNGKey(1), (S, N), 0, vocab_size,
                                   dtype=jnp.int32)
    fused = rnn_bahdanau_attn_decoder_fused(packed, words_seq, state, enc_mem, enc_mem_lens)
    jax.block_until_ready(fused)

    h_cur = state
    for s in range(S):
        lg, h_new, w_s = _reference(params, words_seq[s][:, None], h_cur,
                                    enc_mem, enc_mem_lens)
        np.testing.assert_allclose(np.asarray(fused["logits"][:, s, :]), np.asarray(lg),
                                   rtol=2e-4, atol=2e-4)
        np.testing.assert_allclose(np.asarray(fused["weights"][:, s, :]), np.asarray(w_s),
                                   rtol=2e-4, atol=2e-4)
        h_cur = h_new[None]
    np.testing.assert_allclose(np.asarray(fused["states"][0]), np.asarray(h_cur[0]),
                               rtol=2e-4, atol=2e-4)

    print("KERNEL_OK")
</pallas_src>

<mosaic_0001>
module attributes {stable_mosaic.version = 11 : i64} {
  func.func @_decoder_step_kernel(%arg0: i32, %arg1: memref<8x1xi32, #tpu.memory_space<vmem>>, %arg2: memref<8x128xf32, #tpu.memory_space<vmem>>, %arg3: memref<72x256xf32, #tpu.memory_space<vmem>>, %arg4: memref<128x128xf32, #tpu.memory_space<vmem>>, %arg5: memref<256x384xf32, #tpu.memory_space<vmem>>, %arg6: memref<264x128xf32, #tpu.memory_space<vmem>>, %arg7: memref<1x8x384xf32, #tpu.memory_space<vmem>>, %arg8: memref<8x128xf32, #tpu.memory_space<vmem>>) attributes {dimension_semantics = [#tpu.dimension_semantics<arbitrary>], iteration_bounds = array<i64: 1>, scalar_prefetch = 0 : i64, scratch_operands = 1 : i64, tpu.core_type = #tpu.core_type<tc>, window_params = [{transform_indices = @transform_0, window_bounds = array<i64: 8, 1>}, {pipeline_mode = #tpu.pipeline_mode<synchronous>, transform_indices = @transform_1, window_bounds = array<i64: 8, 128>}, {pipeline_mode = #tpu.pipeline_mode<synchronous>, transform_indices = @transform_2, window_bounds = array<i64: 72, 256>}, {pipeline_mode = #tpu.pipeline_mode<synchronous>, transform_indices = @transform_3, window_bounds = array<i64: 128, 128>}, {pipeline_mode = #tpu.pipeline_mode<synchronous>, transform_indices = @transform_4, window_bounds = array<i64: 256, 384>}, {pipeline_mode = #tpu.pipeline_mode<synchronous>, transform_indices = @transform_5, window_bounds = array<i64: 264, 128>}, {transform_indices = @transform_6, window_bounds = array<i64: 1, 8, 384>}]} {
    %c0_i32 = arith.constant 0 : i32
    %0 = arith.cmpi eq, %arg0, %c0_i32 : i32
    %1 = arith.extui %0 : i1 to i32
    %c0_i32_0 = arith.constant 0 : i32
    %2 = arith.cmpi ne, %1, %c0_i32_0 : i32
    scf.if %2 {
      %c0_36 = arith.constant 0 : index
      %c0_37 = arith.constant 0 : index
      %105 = vector.load %arg2[%c0_36, %c0_37] : memref<8x128xf32, #tpu.memory_space<vmem>>, vector<8x128xf32>
      %c0_38 = arith.constant 0 : index
      %c0_39 = arith.constant 0 : index
      %106 = vector.load %arg8[%c0_38, %c0_39] : memref<8x128xf32, #tpu.memory_space<vmem>>, vector<8x128xf32>
      tpu.vector_store %arg8[%c0_38, %c0_39], %105 {strides = array<i32>} : memref<8x128xf32, #tpu.memory_space<vmem>>, vector<8x128xf32>,
    } else {
    }
    %c0 = arith.constant 0 : index
    %c0_1 = arith.constant 0 : index
    %3 = vector.load %arg8[%c0, %c0_1] : memref<8x128xf32, #tpu.memory_space<vmem>>, vector<8x128xf32>
    %c0_2 = arith.constant 0 : index
    %c0_3 = arith.constant 0 : index
    %4 = vector.load %arg1[%c0_2, %c0_3] : memref<8x1xi32, #tpu.memory_space<vmem>>, vector<8x1xi32>
    %5 = tpu.iota {dimensions = array<i32: 1>} : vector<8x128xi32>
    %6 = vector.broadcast %4 : vector<8x1xi32> to vector<8x128xi32>
    %7 = arith.cmpi eq, %5, %6 : vector<8x128xi32>
    %8 = arith.extui %7 : vector<8x128xi1> to vector<8x128xi32>
    %9 = arith.sitofp %8 : vector<8x128xi32> to vector<8x128xf32>
    %c0_4 = arith.constant 0 : index
    %c0_5 = arith.constant 0 : index
    %10 = vector.load %arg4[%c0_4, %c0_5] : memref<128x128xf32, #tpu.memory_space<vmem>>, vector<128x128xf32>
    %cst = arith.constant dense<0.000000e+00> : vector<8x128xf32>
    %11 = tpu.matmul %9, %10, %cst {dimension_numbers = #tpu.dot_dimension_numbers<[1], [0], [0], [1], [0, 0, 1, 1], [], []>} : vector<8x128xf32>, vector<128x128xf32>, vector<8x128xf32> -> vector<8x128xf32>
    %c0_6 = arith.constant 0 : index
    %c0_7 = arith.constant 0 : index
    %12 = vector.load %arg6[%c0_6, %c0_7] : memref<264x128xf32, #tpu.memory_space<vmem>>, vector<128x128xf32>
    %c256 = arith.constant 256 : index
    %c0_8 = arith.constant 0 : index
    %13 = vector.load %arg6[%c256, %c0_8] : memref<264x128xf32, #tpu.memory_space<vmem>>, vector<8x128xf32>
    %14 = vector.extract_strided_slice %13 {offsets = [0, 0], sizes = [1, 128], strides = [1, 1]} : vector<8x128xf32> to vector<1x128xf32>
    %cst_9 = arith.constant dense<0.000000e+00> : vector<8x128xf32>
    %15 = tpu.matmul %3, %12, %cst_9 {dimension_numbers = #tpu.dot_dimension_numbers<[1], [0], [0], [1], [0, 0, 1, 1], [], []>} : vector<8x128xf32>, vector<128x128xf32>, vector<8x128xf32> -> vector<8x128xf32>
    %c0_10 = arith.constant 0 : index
    %c0_11 = arith.constant 0 : index
    %16 = vector.load %arg3[%c0_10, %c0_11] : memref<72x256xf32, #tpu.memory_space<vmem>>, vector<64x128xf32>
    %17 = vector.shape_cast %16 : vector<64x128xf32> to vector<8x8x128xf32>
    %c0_12 = arith.constant 0 : index
    %c128 = arith.constant 128 : index
    %18 = vector.load %arg3[%c0_12, %c128] : memref<72x256xf32, #tpu.memory_space<vmem>>, vector<64x128xf32>
    %19 = vector.shape_cast %18 : vector<64x128xf32> to vector<8x8x128xf32>
    %c64 = arith.constant 64 : index
    %c0_13 = arith.constant 0 : index
    %20 = vector.load %arg3[%c64, %c0_13] : memref<72x256xf32, #tpu.memory_space<vmem>>, vector<8x128xf32>
    %21 = vector.extract_strided_slice %20 {offsets = [0, 0], sizes = [8, 8], strides = [1, 1]} : vector<8x128xf32> to vector<8x8xf32>
    %22 = vector.shape_cast %15 : vector<8x128xf32> to vector<8x1x128xf32>
    %23 = vector.broadcast %22 : vector<8x1x128xf32> to vector<8x8x128xf32>
    %24 = arith.addf %17, %23 : vector<8x8x128xf32>
    %25 = math.tanh %24 : vector<8x8x128xf32>
    %26 = vector.shape_cast %14 : vector<1x128xf32> to vector<1x1x128xf32>
    %27 = vector.broadcast %26 : vector<1x1x128xf32> to vector<8x8x128xf32>
    %28 = arith.mulf %25, %27 : vector<8x8x128xf32>
    %cst_14 = arith.constant dense<0.000000e+00> : vector<8x8xf32>
    %29 = vector.multi_reduction <add>, %28, %cst_14 [2] : vector<8x8x128xf32> to vector<8x8xf32>
    %30 = arith.addf %29, %21 : vector<8x8xf32>
    %cst_15 = arith.constant dense<0xFF800000> : vector<8xf32>
    %31 = vector.multi_reduction <maximumf>, %30, %cst_15 [1] : vector<8x8xf32> to vector<8xf32>
    %32 = vector.shape_cast %31 : vector<8xf32> to vector<8x1xf32>
    %33 = vector.broadcast %32 : vector<8x1xf32> to vector<8x8xf32>
    %34 = arith.subf %30, %33 : vector<8x8xf32>
    %35 = math.exp %34 : vector<8x8xf32>
    %cst_16 = arith.constant dense<0.000000e+00> : vector<8xf32>
    %36 = vector.multi_reduction <add>, %35, %cst_16 [1] : vector<8x8xf32> to vector<8xf32>
    %37 = vector.shape_cast %36 : vector<8xf32> to vector<8x1xf32>
    %38 = vector.broadcast %37 : vector<8x1xf32> to vector<8x8xf32>
    %39 = arith.divf %35, %38 : vector<8x8xf32>
    %40 = vector.shape_cast %39 : vector<8x8xf32> to vector<8x8x1xf32>
    %41 = vector.broadcast %40 : vector<8x8x1xf32> to vector<8x8x128xf32>
    %42 = arith.mulf %41, %19 : vector<8x8x128xf32>
    %cst_17 = arith.constant dense<0.000000e+00> : vector<8x128xf32>
    %43 = vector.multi_reduction <add>, %42, %cst_17 [1] : vector<8x8x128xf32> to vector<8x128xf32>
    %44 = arith.addf %11, %43 : vector<8x128xf32>
    %c0_18 = arith.constant 0 : index
    %c0_19 = arith.constant 0 : index
    %45 = vector.load %arg5[%c0_18, %c0_19] : memref<256x384xf32, #tpu.memory_space<vmem>>, vector<128x384xf32>
    %c128_20 = arith.constant 128 : index
    %c0_21 = arith.constant 0 : index
    %46 = vector.load %arg5[%c128_20, %c0_21] : memref<256x384xf32, #tpu.memory_space<vmem>>, vector<128x384xf32>
    %cst_22 = arith.constant dense<0.000000e+00> : vector<8x384xf32>
    %47 = tpu.matmul %44, %45, %cst_22 {dimension_numbers = #tpu.dot_dimension_numbers<[1], [0], [0], [1], [0, 0, 1, 1], [], []>} : vector<8x128xf32>, vector<128x384xf32>, vector<8x384xf32> -> vector<8x384xf32>
    %cst_23 = arith.constant dense<0.000000e+00> : vector<8x384xf32>
    %48 = tpu.matmul %3, %46, %cst_23 {dimension_numbers = #tpu.dot_dimension_numbers<[1], [0], [0], [1], [0, 0, 1, 1], [], []>} : vector<8x128xf32>, vector<128x384xf32>, vector<8x384xf32> -> vector<8x384xf32>
    %49 = vector.extract_strided_slice %47 {offsets = [0, 0], sizes = [8, 128], strides = [1, 1]} : vector<8x384xf32> to vector<8x128xf32>
    %50 = vector.extract_strided_slice %13 {offsets = [1, 0], sizes = [1, 128], strides = [1, 1]} : vector<8x128xf32> to vector<1x128xf32>
    %51 = vector.broadcast %50 : vector<1x128xf32> to vector<8x128xf32>
    %52 = arith.addf %49, %51 : vector<8x128xf32>
    %53 = vector.extract_strided_slice %48 {offsets = [0, 0], sizes = [8, 128], strides = [1, 1]} : vector<8x384xf32> to vector<8x128xf32>
    %54 = arith.addf %52, %53 : vector<8x128xf32>
    %55 = vector.extract_strided_slice %13 {offsets = [4, 0], sizes = [1, 128], strides = [1, 1]} : vector<8x128xf32> to vector<1x128xf32>
    %56 = vector.broadcast %55 : vector<1x128xf32> to vector<8x128xf32>
    %57 = arith.addf %54, %56 : vector<8x128xf32>
    %58 = arith.negf %57 : vector<8x128xf32>
    %59 = math.exp %58 : vector<8x128xf32>
    %cst_24 = arith.constant 1.000000e+00 : f32
    %60 = vector.broadcast %cst_24 : f32 to vector<8x128xf32>
    %61 = arith.addf %60, %59 : vector<8x128xf32>
    %62 = arith.divf %60, %61 : vector<8x128xf32>
    %63 = vector.extract_strided_slice %47 {offsets = [0, 128], sizes = [8, 128], strides = [1, 1]} : vector<8x384xf32> to vector<8x128xf32>
    %64 = vector.extract_strided_slice %13 {offsets = [2, 0], sizes = [1, 128], strides = [1, 1]} : vector<8x128xf32> to vector<1x128xf32>
    %65 = vector.broadcast %64 : vector<1x128xf32> to vector<8x128xf32>
    %66 = arith.addf %63, %65 : vector<8x128xf32>
    %67 = vector.extract_strided_slice %48 {offsets = [0, 128], sizes = [8, 128], strides = [1, 1]} : vector<8x384xf32> to vector<8x128xf32>
    %68 = arith.addf %66, %67 : vector<8x128xf32>
    %69 = vector.extract_strided_slice %13 {offsets = [5, 0], sizes = [1, 128], strides = [1, 1]} : vector<8x128xf32> to vector<1x128xf32>
    %70 = vector.broadcast %69 : vector<1x128xf32> to vector<8x128xf32>
    %71 = arith.addf %68, %70 : vector<8x128xf32>
    %72 = arith.negf %71 : vector<8x128xf32>
    %73 = math.exp %72 : vector<8x128xf32>
    %cst_25 = arith.constant 1.000000e+00 : f32
    %74 = vector.broadcast %cst_25 : f32 to vector<8x128xf32>
    %75 = arith.addf %74, %73 : vector<8x128xf32>
    %76 = arith.divf %74, %75 : vector<8x128xf32>
    %77 = vector.extract_strided_slice %47 {offsets = [0, 256], sizes = [8, 128], strides = [1, 1]} : vector<8x384xf32> to vector<8x128xf32>
    %78 = vector.extract_strided_slice %13 {offsets = [3, 0], sizes = [1, 128], strides = [1, 1]} : vector<8x128xf32> to vector<1x128xf32>
    %79 = vector.broadcast %78 : vector<1x128xf32> to vector<8x128xf32>
    %80 = arith.addf %77, %79 : vector<8x128xf32>
    %81 = vector.extract_strided_slice %48 {offsets = [0, 256], sizes = [8, 128], strides = [1, 1]} : vector<8x384xf32> to vector<8x128xf32>
    %82 = vector.extract_strided_slice %13 {offsets = [6, 0], sizes = [1, 128], strides = [1, 1]} : vector<8x128xf32> to vector<1x128xf32>
    %83 = vector.broadcast %82 : vector<1x128xf32> to vector<8x128xf32>
    %84 = arith.addf %81, %83 : vector<8x128xf32>
    %85 = arith.mulf %62, %84 : vector<8x128xf32>
    %86 = arith.addf %80, %85 : vector<8x128xf32>
    %87 = math.tanh %86 : vector<8x128xf32>
    %cst_26 = arith.constant 1.000000e+00 : f32
    %88 = vector.broadcast %cst_26 : f32 to vector<8x128xf32>
    %89 = arith.subf %88, %76 : vector<8x128xf32>
    %90 = arith.mulf %89, %87 : vector<8x128xf32>
    %91 = arith.mulf %76, %3 : vector<8x128xf32>
    %92 = arith.addf %90, %91 : vector<8x128xf32>
    %c128_27 = arith.constant 128 : index
    %c0_28 = arith.constant 0 : index
    %93 = vector.load %arg6[%c128_27, %c0_28] : memref<264x128xf32, #tpu.memory_space<vmem>>, vector<128x128xf32>
    %cst_29 = arith.constant dense<0.000000e+00> : vector<8x128xf32>
    %94 = tpu.matmul %92, %93, %cst_29 {dimension_numbers = #tpu.dot_dimension_numbers<[1], [0], [0], [1], [0, 0, 1, 1], [], []>} : vector<8x128xf32>, vector<128x128xf32>, vector<8x128xf32> -> vector<8x128xf32>
    %95 = vector.extract_strided_slice %13 {offsets = [7, 0], sizes = [1, 128], strides = [1, 1]} : vector<8x128xf32> to vector<1x128xf32>
    %96 = vector.broadcast %95 : vector<1x128xf32> to vector<8x128xf32>
    %97 = arith.addf %94, %96 : vector<8x128xf32>
    %c0_30 = arith.constant 0 : index
    %c0_31 = arith.constant 0 : index
    %98 = vector.load %arg8[%c0_30, %c0_31] : memref<8x128xf32, #tpu.memory_space<vmem>>, vector<8x128xf32>
    tpu.vector_store %arg8[%c0_30, %c0_31], %92 {strides = array<i32>} : memref<8x128xf32, #tpu.memory_space<vmem>>, vector<8x128xf32>,
    %cst_32 = arith.constant 0.000000e+00 : f32
    %99 = vector.broadcast %cst_32 : f32 to vector<8x120xf32>
    %100 = tpu.concatenate %39, %99 in 1 : vector<8x8xf32>, vector<8x120xf32> -> vector<8x128xf32>
    %101 = tpu.concatenate %97, %92, %100 in 1 : vector<8x128xf32>, vector<8x128xf32>, vector<8x128xf32> -> vector<8x384xf32>
    %c0_33 = arith.constant 0 : index
    %c0_34 = arith.constant 0 : index
    %c0_35 = arith.constant 0 : index
    %102 = vector.load %arg7[%c0_33, %c0_34, %c0_35] : memref<1x8x384xf32, #tpu.memory_space<vmem>>, vector<1x8x384xf32>
    %103 = vector.shape_cast %102 : vector<1x8x384xf32> to vector<8x384xf32>
    %104 = vector.shape_cast %101 : vector<8x384xf32> to vector<1x8x384xf32>
    tpu.vector_store %arg7[%c0_33, %c0_34, %c0_35], %104 {strides = array<i32>} : memref<1x8x384xf32, #tpu.memory_space<vmem>>, vector<1x8x384xf32>,
    return
  }
  func.func @transform_0(%arg0: i32) -> (i32, i32) {
    %c0_i32 = arith.constant 0 : i32
    %c0_i32_0 = arith.constant 0 : i32
    return %arg0, %c0_i32 : i32, i32
  }
  func.func @transform_1(%arg0: i32) -> (i32, i32) {
    %c0_i32 = arith.constant 0 : i32
    %c0_i32_0 = arith.constant 0 : i32
    %c0_i32_1 = arith.constant 0 : i32
    return %c0_i32, %c0_i32_0 : i32, i32
  }
  func.func @transform_2(%arg0: i32) -> (i32, i32) {
    %c0_i32 = arith.constant 0 : i32
    %c0_i32_0 = arith.constant 0 : i32
    %c0_i32_1 = arith.constant 0 : i32
    return %c0_i32, %c0_i32_0 : i32, i32
  }
  func.func @transform_3(%arg0: i32) -> (i32, i32) {
    %c0_i32 = arith.constant 0 : i32
    %c0_i32_0 = arith.constant 0 : i32
    %c0_i32_1 = arith.constant 0 : i32
    return %c0_i32, %c0_i32_0 : i32, i32
  }
  func.func @transform_4(%arg0: i32) -> (i32, i32) {
    %c0_i32 = arith.constant 0 : i32
    %c0_i32_0 = arith.constant 0 : i32
    %c0_i32_1 = arith.constant 0 : i32
    return %c0_i32, %c0_i32_0 : i32, i32
  }
  func.func @transform_5(%arg0: i32) -> (i32, i32) {
    %c0_i32 = arith.constant 0 : i32
    %c0_i32_0 = arith.constant 0 : i32
    %c0_i32_1 = arith.constant 0 : i32
    return %c0_i32, %c0_i32_0 : i32, i32
  }
  func.func @transform_6(%arg0: i32) -> (i32, i32, i32) {
    %c0_i32 = arith.constant 0 : i32
    %c0_i32_0 = arith.constant 0 : i32
    %c0_i32_1 = arith.constant 0 : i32
    return %arg0, %c0_i32, %c0_i32_0 : i32, i32, i32
  }
}

</mosaic_0001>

<llo_original>
// kernel: tpu_custom_call.1
$region0: #{tpu_custom_call.1}
  #allocation0 [shape = 'u32[]', space=smem, size = 0x4, offset = 0x4, fixed_abs, tag = 'smem constant byte address 0x4 - core index']
  #allocation1 [shape = 'u32[72,128]{1,0:T(1,128)}', space=vmem, size = 0x9000, scoped, tag = 'internal scratch']
  #allocation2 [shape = 'f32[8,128]{1,0:T(8,128)}', space=vmem, size = 0x1000, scoped, tag = 'scratch operand']
  %s0 = inlined_call_operand.vmem [shape: s32[8,1], index: 0, kind: input, shape index: {}]
  %s1 = inlined_call_operand.vmem [shape: f32[8,128], index: 1, kind: input, shape index: {}]
  %s2 = inlined_call_operand.hbm [shape: f32[72,256], index: 2, kind: input, shape index: {}]
  %s3 = inlined_call_operand.hbm [shape: f32[128,128], index: 3, kind: input, shape index: {}]
  %s4 = inlined_call_operand.hbm [shape: f32[256,384], index: 4, kind: input, shape index: {}]
  %s5 = inlined_call_operand.hbm [shape: f32[264,128], index: 5, kind: input, shape index: {}]
  %s6 = inlined_call_operand.hbm [shape: f32[1,8,384], index: 6, kind: output, shape index: {}]
  %s7 = sld [smem:[#allocation0]]
  $region54: #{tpu_custom_call.1} parent=0
    _
  %s9 = ssub.s32 1, %s7
  %s10 = scalar_select 0, %s9, %s7
  $region1: #{tpu_custom_call.1} parent=0
    #allocation3 [shape = 'u8[73728]{0}', space=vmem, size = 0x12000, scoped, tag = 'input window, operand 2, single buffered']
    #allocation4 [shape = 's32[1]{0}', space=sflag, size = 0x4, scoped, tag = 'scoped memory for tpu_custom_call.1']
    #allocation5 [shape = 's32[1]{0}', space=sflag, size = 0x4, scoped, tag = 'scoped memory for tpu_custom_call.1']
    #allocation6 [shape = 'u8[65536]{0}', space=vmem, size = 0x10000, scoped, tag = 'input window, operand 3, single buffered']
    #allocation7 [shape = 's32[1]{0}', space=sflag, size = 0x4, scoped, tag = 'scoped memory for tpu_custom_call.1']
    #allocation8 [shape = 'u8[393216]{0}', space=vmem, size = 0x60000, scoped, tag = 'input window, operand 4, single buffered']
    #allocation9 [shape = 'u8[135168]{0}', space=vmem, size = 0x21000, scoped, tag = 'input window, operand 5, single buffered']
    #allocation10 [shape = 's32[1]{0}', space=sflag, size = 0x4, scoped, tag = 'scoped memory for tpu_custom_call.1']
    #allocation11 [shape = 'u8[12288]{0}', space=vmem, size = 0x3000, scoped, tag = 'output window, operand 0, single buffered']
    %11 = vsyncpa [#allocation4], 0
    %12 = vsyncpa [#allocation7], 0
    %13 = vsyncpa [#allocation10], 0
    %14 = vsyncpa [#allocation5], 0
    // Predicated region
    $region2: #{tpu_custom_call.1} parent=1 // pred_check
      _
    $region3: #{tpu_custom_call.1} parent=1 // pred_check_branch
      %16 = sbr.rel (0) target = $region5
    $region4: #{tpu_custom_call.1} parent=1 // pred_region
      _
    $region5: #{tpu_custom_call.1} parent=1 // pred_fallthru
      _
    // Predicated region
    $region6: #{tpu_custom_call.1} parent=1 // pred_check
      _
    $region7: #{tpu_custom_call.1} parent=1 // pred_check_branch
      %18 = sbr.rel (0) target = $region9
    $region8: #{tpu_custom_call.1} parent=1 // pred_region
      _
    $region9: #{tpu_custom_call.1} parent=1 // pred_fallthru
      _
    // Predicated region
    $region10: #{tpu_custom_call.1} parent=1 // pred_check
      _
    $region11: #{tpu_custom_call.1} parent=1 // pred_check_branch
      %20 = sbr.rel (0) target = $region13
    $region12: #{tpu_custom_call.1} parent=1 // pred_region
      %22 = vsyncadd [#allocation4], 0
      %s23 = sshll.u32 %s2, 4
      %s24 = int_to_ptr.hbm [resolvable:$true] %s23
      %s25 = sshll.u32 [#allocation3], 4
      %s26 = int_to_ptr.vmem [resolvable:$true] %s25
      %31 = dma.hbm_to_vmem [thread:$0]  %s24, 2304, %s26, [#allocation4], 256, 256, 16
    $region13: #{tpu_custom_call.1} parent=1 // pred_fallthru
      _
    // Predicated region
    $region14: #{tpu_custom_call.1} parent=1 // pred_check
      _
    $region15: #{tpu_custom_call.1} parent=1 // pred_check_branch
      %33 = sbr.rel (0) target = $region17
    $region16: #{tpu_custom_call.1} parent=1 // pred_region
      %35 = vsyncadd [#allocation7], 0
      %s36 = sshll.u32 %s3, 4
      %s37 = int_to_ptr.hbm [resolvable:$true] %s36
      %s38 = sshll.u32 [#allocation6], 4
      %s39 = int_to_ptr.vmem [resolvable:$true] %s38
      %44 = dma.hbm_to_vmem [thread:$0]  %s37, 2048, %s39, [#allocation7], 128, 128, 8
    $region17: #{tpu_custom_call.1} parent=1 // pred_fallthru
      _
    // Predicated region
    $region18: #{tpu_custom_call.1} parent=1 // pred_check
      _
    $region19: #{tpu_custom_call.1} parent=1 // pred_check_branch
      %46 = sbr.rel (0) target = $region21
    $region20: #{tpu_custom_call.1} parent=1 // pred_region
      %48 = vsyncadd [#allocation7], 0
      %s49 = sshll.u32 %s4, 4
      %s50 = int_to_ptr.hbm [resolvable:$true] %s49
      %s51 = sshll.u32 [#allocation8], 4
      %s52 = int_to_ptr.vmem [resolvable:$true] %s51
      %57 = dma.hbm_to_vmem [thread:$0]  %s50, 12288, %s52, [#allocation7], 384, 384, 24
    $region21: #{tpu_custom_call.1} parent=1 // pred_fallthru
      _
    // Predicated region
    $region22: #{tpu_custom_call.1} parent=1 // pred_check
      _
    $region23: #{tpu_custom_call.1} parent=1 // pred_check_branch
      %59 = sbr.rel (0) target = $region25
    $region24: #{tpu_custom_call.1} parent=1 // pred_region
      %61 = vsyncadd [#allocation10], 0
      %s62 = sshll.u32 %s5, 4
      %s63 = int_to_ptr.hbm [resolvable:$true] %s62
      %s64 = sshll.u32 [#allocation9], 4
      %s65 = int_to_ptr.vmem [resolvable:$true] %s64
      %70 = dma.hbm_to_vmem [thread:$0]  %s63, 4224, %s65, [#allocation10], 128, 128, 8
    $region25: #{tpu_custom_call.1} parent=1 // pred_fallthru
      _
    // Predicated region
    $region26: #{tpu_custom_call.1} parent=1 // pred_check
      _
    $region27: #{tpu_custom_call.1} parent=1 // pred_check_branch
      %72 = sbr.rel (0) target = $region29
    $region28: #{tpu_custom_call.1} parent=1 // pred_region
      %74 = dma.done [#allocation4], 2304
    $region29: #{tpu_custom_call.1} parent=1 // pred_fallthru
      _
    // Predicated region
    $region30: #{tpu_custom_call.1} parent=1 // pred_check
      _
    $region31: #{tpu_custom_call.1} parent=1 // pred_check_branch
      %76 = sbr.rel (0) target = $region33
    $region32: #{tpu_custom_call.1} parent=1 // pred_region
      %78 = dma.done [#allocation7], 2048
    $region33: #{tpu_custom_call.1} parent=1 // pred_fallthru
      _
    // Predicated region
    $region34: #{tpu_custom_call.1} parent=1 // pred_check
      _
    $region35: #{tpu_custom_call.1} parent=1 // pred_check_branch
      %80 = sbr.rel (0) target = $region37
    $region36: #{tpu_custom_call.1} parent=1 // pred_region
      %82 = dma.done [#allocation7], 12288
    $region37: #{tpu_custom_call.1} parent=1 // pred_fallthru
      _
    // Predicated region
    $region38: #{tpu_custom_call.1} parent=1 // pred_check
      _
    $region39: #{tpu_custom_call.1} parent=1 // pred_check_branch
      %84 = sbr.rel (0) target = $region41
    $region40: #{tpu_custom_call.1} parent=1 // pred_region
      %86 = dma.done [#allocation10], 4224
    $region41: #{tpu_custom_call.1} parent=1 // pred_fallthru
      _
    %p87 = scmp.eq.s32.totalorder 0, 0
    // Predicated region
    $region42: #{tpu_custom_call.1} parent=1 // pred_check
      %p88 = pneg %p87
    $region43: #{tpu_custom_call.1} parent=1 // pred_check_branch
      %90 = sbr.rel (%p88) target = $region45
    $region44: #{tpu_custom_call.1} parent=1 // pred_region
      %v91 = vld [vmem:[%s1] sm:$0xff]
      %92 = vst [vmem:[#allocation2] sm:$0xff] %v91
    $region45: #{tpu_custom_call.1} parent=1 // pred_fallthru
      _
    %v93 = vld [vmem:[#allocation2] sm:$0xff]
    %v94 = vld [vmem:[%s0] sm:$0xff]
    %v95 = vlaneseq
    %v96 = vand.u32 %v95, 127
    %97 = vset.pattern.permute.xlu0 0
    %98 = vperm.xlu0 %97, %v94
    %v99 = vpop.permute.xlu0 %98
    %vm100 = vcmp.eq.s32.totalorder %v96, %v99
    %v101 = vsel %vm100, 1, 0
    %v102 = vcvt.s32.f32 %v101
    %v103 = vld [vmem:[#allocation6] sm:$0xff]
    %v104 = vld [vmem:[#allocation6 + $0x8] sm:$0xff]
    %v105 = vld [vmem:[#allocation6 + $0x10] sm:$0xff]
    %v106 = vld [vmem:[#allocation6 + $0x18] sm:$0xff]
    %v107 = vld [vmem:[#allocation6 + $0x20] sm:$0xff]
    %v108 = vld [vmem:[#allocation6 + $0x28] sm:$0xff]
    %v109 = vld [vmem:[#allocation6 + $0x30] sm:$0xff]
    %v110 = vld [vmem:[#allocation6 + $0x38] sm:$0xff]
    %v111 = vld [vmem:[#allocation6 + $0x40] sm:$0xff]
    %v112 = vld [vmem:[#allocation6 + $0x48] sm:$0xff]
    %v113 = vld [vmem:[#allocation6 + $0x50] sm:$0xff]
    %v114 = vld [vmem:[#allocation6 + $0x58] sm:$0xff]
    %v115 = vld [vmem:[#allocation6 + $0x60] sm:$0xff]
    %v116 = vld [vmem:[#allocation6 + $0x68] sm:$0xff]
    %v117 = vld [vmem:[#allocation6 + $0x70] sm:$0xff]
    %v118 = vld [vmem:[#allocation6 + $0x78] sm:$0xff]
    %v119 = vld [vmem:[#allocation9] sm:$0xff]
    %v120 = vld [vmem:[#allocation9 + $0x8] sm:$0xff]
    %v121 = vld [vmem:[#allocation9 + $0x10] sm:$0xff]
    %v122 = vld [vmem:[#allocation9 + $0x18] sm:$0xff]
    %v123 = vld [vmem:[#allocation9 + $0x20] sm:$0xff]
    %v124 = vld [vmem:[#allocation9 + $0x28] sm:$0xff]
    %v125 = vld [vmem:[#allocation9 + $0x30] sm:$0xff]
    %v126 = vld [vmem:[#allocation9 + $0x38] sm:$0xff]
    %v127 = vld [vmem:[#allocation9 + $0x40] sm:$0xff]
    %v128 = vld [vmem:[#allocation9 + $0x48] sm:$0xff]
    %v129 = vld [vmem:[#allocation9 + $0x50] sm:$0xff]
    %v130 = vld [vmem:[#allocation9 + $0x58] sm:$0xff]
    %v131 = vld [vmem:[#allocation9 + $0x60] sm:$0xff]
    %v132 = vld [vmem:[#allocation9 + $0x68] sm:$0xff]
    %v133 = vld [vmem:[#allocation9 + $0x70] sm:$0xff]
    %v134 = vld [vmem:[#allocation9 + $0x78] sm:$0xff]
    %v135 = vld [vmem:[#allocation9 + $0x100] sm:$0xff]
    %136 = vmatpush.msra.mxu0 %v134
    %137 = vmatpush.msra.mxu0 %v133
    %138 = vmatpush.msra.mxu0 %v132
    %139 = vmatpush.msra.mxu0 %v131
    %140 = vmatpush.msra.mxu0 %v130
    %141 = vmatpush.msra.mxu0 %v129
    %142 = vmatpush.msra.mxu0 %v128
    %143 = vmatpush.msra.mxu0 %v127
    %144 = vmatpush.msra.mxu0 %v126
    %145 = vmatpush.msra.mxu0 %v125
    %146 = vmatpush.msra.mxu0 %v124
    %147 = vmatpush.msra.mxu0 %v123
    %148 = vmatpush.msra.mxu0 %v122
    %149 = vmatpush.msra.mxu0 %v121
    %150 = vmatpush.msra.mxu0 %v120
    %151 = vmatpush.msra.mxu0 %v119
    %152 = vmatmul.f32.gmra.mxu0 %v93
    %v153 = vpop.f32.mrf.mxu0
    %v154 = vadd.f32 0.0, %v153
    %155 = vdwg.mxu0
    %v156 = vld [vmem:[#allocation3] sm:$0xff]
    %v157 = vld [vmem:[#allocation3 + $0x10] sm:$0xff]
    %v158 = vld [vmem:[#allocation3 + $0x20] sm:$0xff]
    %v159 = vld [vmem:[#allocation3 + $0x30] sm:$0xff]
    %v160 = vld [vmem:[#allocation3 + $0x40] sm:$0xff]
    %v161 = vld [vmem:[#allocation3 + $0x50] sm:$0xff]
    %v162 = vld [vmem:[#allocation3 + $0x60] sm:$0xff]
    %v163 = vld [vmem:[#allocation3 + $0x70] sm:$0xff]
    %v164 = vld [vmem:[#allocation3 + $0x8] sm:$0xff]
    %v165 = vld [vmem:[#allocation3 + $0x18] sm:$0xff]
    %v166 = vld [vmem:[#allocation3 + $0x28] sm:$0xff]
    %v167 = vld [vmem:[#allocation3 + $0x38] sm:$0xff]
    %v168 = vld [vmem:[#allocation3 + $0x48] sm:$0xff]
    %v169 = vld [vmem:[#allocation3 + $0x58] sm:$0xff]
    %v170 = vld [vmem:[#allocation3 + $0x68] sm:$0xff]
    %v171 = vld [vmem:[#allocation3 + $0x78] sm:$0xff]
    %v172 = vld [vmem:[#allocation3 + $0x80] sm:$0xff]
    %v174 = vrot.slane %v154, 1
    %v175 = vrot.slane %v154, 2
    %v176 = vrot.slane %v154, 3
    %v177 = vrot.slane %v154, 4
    %v178 = vrot.slane %v154, 5
    %v179 = vrot.slane %v154, 6
    %v180 = vrot.slane %v154, 7
    %v181 = vperm.slane %v154, 0
    %v182 = vperm.slane %v174, 0
    %v183 = vperm.slane %v175, 0
    %v184 = vperm.slane %v176, 0
    %v185 = vperm.slane %v177, 0
    %v186 = vperm.slane %v178, 0
    %v187 = vperm.slane %v179, 0
    %v188 = vperm.slane %v180, 0
    %v197 = vadd.f32 %v156, %v181
    %v198 = vadd.f32 %v157, %v182
    %v199 = vadd.f32 %v158, %v183
    %v200 = vadd.f32 %v159, %v184
    %v201 = vadd.f32 %v160, %v185
    %v202 = vadd.f32 %v161, %v186
    %v203 = vadd.f32 %v162, %v187
    %v204 = vadd.f32 %v163, %v188
    %v205 = vtanh.pop %v197
    %v206 = vtanh.pop %v198
    %v207 = vtanh.pop %v199
    %v208 = vtanh.pop %v200
    %v209 = vtanh.pop %v201
    %v210 = vtanh.pop %v202
    %v211 = vtanh.pop %v203
    %v212 = vtanh.pop %v204
    %v213 = vperm.slane %v135, 0
    %v214 = vmul.f32 %v205, %v213
    %v215 = vmul.f32 %v206, %v213
    %v216 = vmul.f32 %v207, %v213
    %v217 = vmul.f32 %v208, %v213
    %v218 = vmul.f32 %v209, %v213
    %v219 = vmul.f32 %v210, %v213
    %v220 = vmul.f32 %v211, %v213
    %v221 = vmul.f32 %v212, %v213
    %222 = vadd.xlane.f32.xlu0 %v214
    %v223 = vpop.xlane.xlu0 %222
    %224 = vadd.xlane.f32.xlu0 %v215
    %v225 = vpop.xlane.xlu0 %224
    %226 = vadd.xlane.f32.xlu0 %v216
    %v227 = vpop.xlane.xlu0 %226
    %228 = vadd.xlane.f32.xlu0 %v217
    %v229 = vpop.xlane.xlu0 %228
    %230 = vadd.xlane.f32.xlu0 %v218
    %v231 = vpop.xlane.xlu0 %230
    %232 = vadd.xlane.f32.xlu0 %v219
    %v233 = vpop.xlane.xlu0 %232
    %234 = vadd.xlane.f32.xlu0 %v220
    %v235 = vpop.xlane.xlu0 %234
    %236 = vadd.xlane.f32.xlu0 %v221
    %v237 = vpop.xlane.xlu0 %236
    %v239 = vperm.slane %v172, 0
    %v240 = vlaneseq
    %v241 = vshrl.u32 %v240, 7
    %243 = vset.pattern.permute.xlu0 %v241
    %244 = vperm.xlu0 %243, %v239
    %v245 = vpop.permute.xlu0 %244
    %v246 = vperm.slane %v172, 1
    %v247 = vlaneseq
    %v248 = vshrl.u32 %v247, 7
    %250 = vset.pattern.permute.xlu0 %v248
    %251 = vperm.xlu0 %250, %v246
    %v252 = vpop.permute.xlu0 %251
    %v253 = vperm.slane %v172, 2
    %v254 = vlaneseq
    %v255 = vshrl.u32 %v254, 7
    %257 = vset.pattern.permute.xlu0 %v255
    %258 = vperm.xlu0 %257, %v253
    %v259 = vpop.permute.xlu0 %258
    %v260 = vperm.slane %v172, 3
    %v261 = vlaneseq
    %v262 = vshrl.u32 %v261, 7
    %264 = vset.pattern.permute.xlu0 %v262
    %265 = vperm.xlu0 %264, %v260
    %v266 = vpop.permute.xlu0 %265
    %v267 = vperm.slane %v172, 4
    %v268 = vlaneseq
    %v269 = vshrl.u32 %v268, 7
    %271 = vset.pattern.permute.xlu0 %v269
    %272 = vperm.xlu0 %271, %v267
    %v273 = vpop.permute.xlu0 %272
    %v274 = vperm.slane %v172, 5
    %v275 = vlaneseq
    %v276 = vshrl.u32 %v275, 7
    %278 = vset.pattern.permute.xlu0 %v276
    %279 = vperm.xlu0 %278, %v274
    %v280 = vpop.permute.xlu0 %279
    %v281 = vperm.slane %v172, 6
    %v282 = vlaneseq
    %v283 = vshrl.u32 %v282, 7
    %285 = vset.pattern.permute.xlu0 %v283
    %286 = vperm.xlu0 %285, %v281
    %v287 = vpop.permute.xlu0 %286
    %v288 = vperm.slane %v172, 7
    %v289 = vlaneseq
    %v290 = vshrl.u32 %v289, 7
    %292 = vset.pattern.permute.xlu0 %v290
    %293 = vperm.xlu0 %292, %v288
    %v294 = vpop.permute.xlu0 %293
    %v303 = vadd.f32 %v223, %v245
    %v304 = vadd.f32 %v225, %v252
    %v305 = vadd.f32 %v227, %v259
    %v306 = vadd.f32 %v229, %v266
    %v307 = vadd.f32 %v231, %v273
    %v308 = vadd.f32 %v233, %v280
    %v309 = vadd.f32 %v235, %v287
    %v310 = vadd.f32 %v237, %v294
    %319 = vset.pattern.permute.xlu0 0
    %320 = vperm.xlu0 %319, %v303
    %v321 = vpop.permute.xlu0 %320
    %322 = vset.pattern.permute.xlu0 0
    %323 = vperm.xlu0 %322, %v304
    %v324 = vpop.permute.xlu0 %323
    %325 = vset.pattern.permute.xlu0 0
    %326 = vperm.xlu0 %325, %v305
    %v327 = vpop.permute.xlu0 %326
    %328 = vset.pattern.permute.xlu0 0
    %329 = vperm.xlu0 %328, %v306
    %v330 = vpop.permute.xlu0 %329
    %331 = vset.pattern.permute.xlu0 0
    %332 = vperm.xlu0 %331, %v307
    %v333 = vpop.permute.xlu0 %332
    %334 = vset.pattern.permute.xlu0 0
    %335 = vperm.xlu0 %334, %v308
    %v336 = vpop.permute.xlu0 %335
    %337 = vset.pattern.permute.xlu0 0
    %338 = vperm.xlu0 %337, %v309
    %v339 = vpop.permute.xlu0 %338
    %340 = vset.pattern.permute.xlu0 0
    %341 = vperm.xlu0 %340, %v310
    %v342 = vpop.permute.xlu0 %341
    %v343 = vperm.slane %v321, %v96
    %v344 = vperm.slane %v324, %v96
    %v345 = vperm.slane %v327, %v96
    %v346 = vperm.slane %v330, %v96
    %v347 = vperm.slane %v333, %v96
    %v348 = vperm.slane %v336, %v96
    %v349 = vperm.slane %v339, %v96
    %v350 = vperm.slane %v342, %v96
    %vm351 = vcmask 1041409
    %v352 = vsel %vm351, %v344, %v343
    %vm353 = vcmask 1042434
    %v354 = vsel %vm353, %v345, %v352
    %vm355 = vcmask 1043459
    %v356 = vsel %vm355, %v346, %v354
    %vm357 = vcmask 1044484
    %v358 = vsel %vm357, %v347, %v356
    %vm359 = vcmask 1045509
    %v360 = vsel %vm359, %v348, %v358
    %vm361 = vcmask 1046534
    %v362 = vsel %vm361, %v349, %v360
    %vm363 = vcmask 1047559
    %v364 = vsel %vm363, %v350, %v362
    %vm366 = vcmask 64512
    %v367 = vsel %vm366, %v364, -inf
    %368 = vmax.xlane.f32.xlu0 %v367
    %v369 = vpop.xlane.xlu0 %368
    %v371 = vperm.slane %v369, 0
    %v372 = vperm.slane %v369, 1
    %v373 = vperm.slane %v369, 2
    %v374 = vperm.slane %v369, 3
    %v375 = vperm.slane %v369, 4
    %v376 = vperm.slane %v369, 5
    %v377 = vperm.slane %v369, 6
    %v378 = vperm.slane %v369, 7
    %v387 = vsub.f32 %v303, %v371
    %v388 = vsub.f32 %v304, %v372
    %v389 = vsub.f32 %v305, %v373
    %v390 = vsub.f32 %v306, %v374
    %v391 = vsub.f32 %v307, %v375
    %v392 = vsub.f32 %v308, %v376
    %v393 = vsub.f32 %v309, %v377
    %v394 = vsub.f32 %v310, %v378
    %v395 = vmul.f32 %v387, 1.442695
    %v396 = vpow.pop %v395
    %v397 = vmul.f32 %v388, 1.442695
    %v398 = vpow.pop %v397
    %v399 = vmul.f32 %v389, 1.442695
    %v400 = vpow.pop %v399
    %v401 = vmul.f32 %v390, 1.442695
    %v402 = vpow.pop %v401
    %v403 = vmul.f32 %v391, 1.442695
    %v404 = vpow.pop %v403
    %v405 = vmul.f32 %v392, 1.442695
    %v406 = vpow.pop %v405
    %v407 = vmul.f32 %v393, 1.442695
    %v408 = vpow.pop %v407
    %v409 = vmul.f32 %v394, 1.442695
    %v410 = vpow.pop %v409
    %419 = vset.pattern.permute.xlu0 0
    %420 = vperm.xlu0 %419, %v396
    %v421 = vpop.permute.xlu0 %420
    %422 = vset.pattern.permute.xlu0 0
    %423 = vperm.xlu0 %422, %v398
    %v424 = vpop.permute.xlu0 %423
    %425 = vset.pattern.permute.xlu0 0
    %426 = vperm.xlu0 %425, %v400
    %v427 = vpop.permute.xlu0 %426
    %428 = vset.pattern.permute.xlu0 0
    %429 = vperm.xlu0 %428, %v402
    %v430 = vpop.permute.xlu0 %429
    %431 = vset.pattern.permute.xlu0 0
    %432 = vperm.xlu0 %431, %v404
    %v433 = vpop.permute.xlu0 %432
    %434 = vset.pattern.permute.xlu0 0
    %435 = vperm.xlu0 %434, %v406
    %v436 = vpop.permute.xlu0 %435
    %437 = vset.pattern.permute.xlu0 0
    %438 = vperm.xlu0 %437, %v408
    %v439 = vpop.permute.xlu0 %438
    %440 = vset.pattern.permute.xlu0 0
    %441 = vperm.xlu0 %440, %v410
    %v442 = vpop.permute.xlu0 %441
    %v443 = vperm.slane %v421, %v96
    %v444 = vperm.slane %v424, %v96
    %v445 = vperm.slane %v427, %v96
    %v446 = vperm.slane %v430, %v96
    %v447 = vperm.slane %v433, %v96
    %v448 = vperm.slane %v436, %v96
    %v449 = vperm.slane %v439, %v96
    %v450 = vperm.slane %v442, %v96
    %v451 = vsel %vm351, %v444, %v443
    %v452 = vsel %vm353, %v445, %v451
    %v453 = vsel %vm355, %v446, %v452
    %v454 = vsel %vm357, %v447, %v453
    %v455 = vsel %vm359, %v448, %v454
    %v456 = vsel %vm361, %v449, %v455
    %v457 = vsel %vm363, %v450, %v456
    %v459 = vsel %vm366, %v457, 0.0
    %460 = vadd.xlane.f32.xlu0 %v459
    %v461 = vpop.xlane.xlu0 %460
    %v463 = vperm.slane %v461, 0
    %v464 = vperm.slane %v461, 1
    %v465 = vperm.slane %v461, 2
    %v466 = vperm.slane %v461, 3
    %v467 = vperm.slane %v461, 4
    %v468 = vperm.slane %v461, 5
    %v469 = vperm.slane %v461, 6
    %v470 = vperm.slane %v461, 7
    %v479 = vrcp.pop %v463
    %v480 = vmul.f32 %v463, %v479
    %v481 = vsub.f32 1.0, %v480
    %v482 = vmul.f32 %v479, %v481
    %v483 = vadd.f32 %v479, %v482
    %vm484 = vweird.f32 %v463
    %vm485 = vweird.f32 %v479
    %vm486 = vmor %vm484, %vm485
    %v487 = vsel %vm486, %v479, %v483
    %v488 = vand.u32 2147483647, %v463
    %vm489 = vcmp.eq.f32.partialorder %v488, 8.507059e+37
    %v490 = vand.u32 %v463, 2147483648
    %v491 = vor.u32 1.1754944e-38, %v490
    %v492 = vsel %vm489, %v491, %v487
    %v493 = vmul.f32 %v396, %v492
    %v494 = vrcp.pop %v464
    %v495 = vmul.f32 %v464, %v494
    %v496 = vsub.f32 1.0, %v495
    %v497 = vmul.f32 %v494, %v496
    %v498 = vadd.f32 %v494, %v497
    %vm499 = vweird.f32 %v464
    %vm500 = vweird.f32 %v494
    %vm501 = vmor %vm499, %vm500
    %v502 = vsel %vm501, %v494, %v498
    %v503 = vand.u32 2147483647, %v464
    %vm504 = vcmp.eq.f32.partialorder %v503, 8.507059e+37
    %v505 = vand.u32 %v464, 2147483648
    %v506 = vor.u32 1.1754944e-38, %v505
    %v507 = vsel %vm504, %v506, %v502
    %v508 = vmul.f32 %v398, %v507
    %v509 = vrcp.pop %v465
    %v510 = vmul.f32 %v465, %v509
    %v511 = vsub.f32 1.0, %v510
    %v512 = vmul.f32 %v509, %v511
    %v513 = vadd.f32 %v509, %v512
    %vm514 = vweird.f32 %v465
    %vm515 = vweird.f32 %v509
    %vm516 = vmor %vm514, %vm515
    %v517 = vsel %vm516, %v509, %v513
    %v518 = vand.u32 2147483647, %v465
    %vm519 = vcmp.eq.f32.partialorder %v518, 8.507059e+37
    %v520 = vand.u32 %v465, 2147483648
    %v521 = vor.u32 1.1754944e-38, %v520
    %v522 = vsel %vm519, %v521, %v517
    %v523 = vmul.f32 %v400, %v522
    %v524 = vrcp.pop %v466
    %v525 = vmul.f32 %v466, %v524
    %v526 = vsub.f32 1.0, %v525
    %v527 = vmul.f32 %v524, %v526
    %v528 = vadd.f32 %v524, %v527
    %vm529 = vweird.f32 %v466
    %vm530 = vweird.f32 %v524
    %vm531 = vmor %vm529, %vm530
    %v532 = vsel %vm531, %v524, %v528
    %v533 = vand.u32 2147483647, %v466
    %vm534 = vcmp.eq.f32.partialorder %v533, 8.507059e+37
    %v535 = vand.u32 %v466, 2147483648
    %v536 = vor.u32 1.1754944e-38, %v535
    %v537 = vsel %vm534, %v536, %v532
    %v538 = vmul.f32 %v402, %v537
    %v539 = vrcp.pop %v467
    %v540 = vmul.f32 %v467, %v539
    %v541 = vsub.f32 1.0, %v540
    %v542 = vmul.f32 %v539, %v541
    %v543 = vadd.f32 %v539, %v542
    %vm544 = vweird.f32 %v467
    %vm545 = vweird.f32 %v539
    %vm546 = vmor %vm544, %vm545
    %v547 = vsel %vm546, %v539, %v543
    %v548 = vand.u32 2147483647, %v467
    %vm549 = vcmp.eq.f32.partialorder %v548, 8.507059e+37
    %v550 = vand.u32 %v467, 2147483648
    %v551 = vor.u32 1.1754944e-38, %v550
    %v552 = vsel %vm549, %v551, %v547
    %v553 = vmul.f32 %v404, %v552
    %v554 = vrcp.pop %v468
    %v555 = vmul.f32 %v468, %v554
    %v556 = vsub.f32 1.0, %v555
    %v557 = vmul.f32 %v554, %v556
    %v558 = vadd.f32 %v554, %v557
    %vm559 = vweird.f32 %v468
    %vm560 = vweird.f32 %v554
    %vm561 = vmor %vm559, %vm560
    %v562 = vsel %vm561, %v554, %v558
    %v563 = vand.u32 2147483647, %v468
    %vm564 = vcmp.eq.f32.partialorder %v563, 8.507059e+37
    %v565 = vand.u32 %v468, 2147483648
    %v566 = vor.u32 1.1754944e-38, %v565
    %v567 = vsel %vm564, %v566, %v562
    %v568 = vmul.f32 %v406, %v567
    %v569 = vrcp.pop %v469
    %v570 = vmul.f32 %v469, %v569
    %v571 = vsub.f32 1.0, %v570
    %v572 = vmul.f32 %v569, %v571
    %v573 = vadd.f32 %v569, %v572
    %vm574 = vweird.f32 %v469
    %vm575 = vweird.f32 %v569
    %vm576 = vmor %vm574, %vm575
    %v577 = vsel %vm576, %v569, %v573
    %v578 = vand.u32 2147483647, %v469
    %vm579 = vcmp.eq.f32.partialorder %v578, 8.507059e+37
    %v580 = vand.u32 %v469, 2147483648
    %v581 = vor.u32 1.1754944e-38, %v580
    %v582 = vsel %vm579, %v581, %v577
    %v583 = vmul.f32 %v408, %v582
    %v584 = vrcp.pop %v470
    %v585 = vmul.f32 %v470, %v584
    %v586 = vsub.f32 1.0, %v585
    %v587 = vmul.f32 %v584, %v586
    %v588 = vadd.f32 %v584, %v587
    %vm589 = vweird.f32 %v470
    %vm590 = vweird.f32 %v584
    %vm591 = vmor %vm589, %vm590
    %v592 = vsel %vm591, %v584, %v588
    %v593 = vand.u32 2147483647, %v470
    %vm594 = vcmp.eq.f32.partialorder %v593, 8.507059e+37
    %v595 = vand.u32 %v470, 2147483648
    %v596 = vor.u32 1.1754944e-38, %v595
    %v597 = vsel %vm594, %v596, %v592
    %v598 = vmul.f32 %v410, %v597
    %600 = vset.pattern.permute.xlu0 0
    %601 = vperm.xlu0 %600, %v493
    %v602 = vpop.permute.xlu0 %601
    %605 = vset.pattern.permute.xlu0 0
    %606 = vperm.xlu0 %605, %v508
    %v607 = vpop.permute.xlu0 %606
    %610 = vset.pattern.permute.xlu0 0
    %611 = vperm.xlu0 %610, %v523
    %v612 = vpop.permute.xlu0 %611
    %615 = vset.pattern.permute.xlu0 0
    %616 = vperm.xlu0 %615, %v538
    %v617 = vpop.permute.xlu0 %616
    %620 = vset.pattern.permute.xlu0 0
    %621 = vperm.xlu0 %620, %v553
    %v622 = vpop.permute.xlu0 %621
    %625 = vset.pattern.permute.xlu0 0
    %626 = vperm.xlu0 %625, %v568
    %v627 = vpop.permute.xlu0 %626
    %630 = vset.pattern.permute.xlu0 0
    %631 = vperm.xlu0 %630, %v583
    %v632 = vpop.permute.xlu0 %631
    %635 = vset.pattern.permute.xlu0 0
    %636 = vperm.xlu0 %635, %v598
    %v637 = vpop.permute.xlu0 %636
    %v639 = vmul.f32 %v602, %v164
    %v640 = vmul.f32 %v607, %v165
    %v641 = vmul.f32 %v612, %v166
    %v642 = vmul.f32 %v617, %v167
    %v643 = vmul.f32 %v622, %v168
    %v644 = vmul.f32 %v627, %v169
    %v645 = vmul.f32 %v632, %v170
    %v646 = vmul.f32 %v637, %v171
    %v647 = vrot.slane %v639, 4
    %v648 = vadd.f32 %v639, %v647
    %v649 = vrot.slane %v648, 2
    %v650 = vadd.f32 %v648, %v649
    %v651 = vrot.slane %v650, 1
    %v652 = vadd.f32 %v650, %v651
    %v653 = vrot.slane %v640, 4
    %v654 = vadd.f32 %v640, %v653
    %v655 = vrot.slane %v654, 2
    %v656 = vadd.f32 %v654, %v655
    %v657 = vrot.slane %v656, 1
    %v658 = vadd.f32 %v656, %v657
    %v659 = vrot.slane %v641, 4
    %v660 = vadd.f32 %v641, %v659
    %v661 = vrot.slane %v660, 2
    %v662 = vadd.f32 %v660, %v661
    %v663 = vrot.slane %v662, 1
    %v664 = vadd.f32 %v662, %v663
    %v665 = vrot.slane %v642, 4
    %v666 = vadd.f32 %v642, %v665
    %v667 = vrot.slane %v666, 2
    %v668 = vadd.f32 %v666, %v667
    %v669 = vrot.slane %v668, 1
    %v670 = vadd.f32 %v668, %v669
    %v671 = vrot.slane %v643, 4
    %v672 = vadd.f32 %v643, %v671
    %v673 = vrot.slane %v672, 2
    %v674 = vadd.f32 %v672, %v673
    %v675 = vrot.slane %v674, 1
    %v676 = vadd.f32 %v674, %v675
    %v677 = vrot.slane %v644, 4
    %v678 = vadd.f32 %v644, %v677
    %v679 = vrot.slane %v678, 2
    %v680 = vadd.f32 %v678, %v679
    %v681 = vrot.slane %v680, 1
    %v682 = vadd.f32 %v680, %v681
    %v683 = vrot.slane %v645, 4
    %v684 = vadd.f32 %v645, %v683
    %v685 = vrot.slane %v684, 2
    %v686 = vadd.f32 %v684, %v685
    %v687 = vrot.slane %v686, 1
    %v688 = vadd.f32 %v686, %v687
    %v689 = vrot.slane %v646, 4
    %v690 = vadd.f32 %v646, %v689
    %v691 = vrot.slane %v690, 2
    %v692 = vadd.f32 %v690, %v691
    %v693 = vrot.slane %v692, 1
    %v694 = vadd.f32 %v692, %v693
    %v703 = vsel %vm351, %v658, %v652
    %v704 = vsel %vm353, %v664, %v703
    %v705 = vsel %vm355, %v670, %v704
    %v706 = vsel %vm357, %v676, %v705
    %v707 = vsel %vm359, %v682, %v706
    %v708 = vsel %vm361, %v688, %v707
    %v709 = vsel %vm363, %v694, %v708
    %711 = vmatpush.msra.mxu0 %v118
    %712 = vmatpush.msra.mxu0 %v117
    %713 = vmatpush.msra.mxu0 %v116
    %714 = vmatpush.msra.mxu0 %v115
    %715 = vmatpush.msra.mxu0 %v114
    %716 = vmatpush.msra.mxu0 %v113
    %717 = vmatpush.msra.mxu0 %v112
    %718 = vmatpush.msra.mxu0 %v111
    %719 = vmatpush.msra.mxu0 %v110
    %720 = vmatpush.msra.mxu0 %v109
    %721 = vmatpush.msra.mxu0 %v108
    %722 = vmatpush.msra.mxu0 %v107
    %723 = vmatpush.msra.mxu0 %v106
    %724 = vmatpush.msra.mxu0 %v105
    %725 = vmatpush.msra.mxu0 %v104
    %726 = vmatpush.msra.mxu0 %v103
    %727 = vmatmul.f32.gmra.mxu0 %v102
    %v728 = vpop.f32.mrf.mxu0
    %v729 = vadd.f32 %v709, %v728
    %730 = vdwg.mxu0
    %v731 = vld [vmem:[#allocation8] sm:$0xff]
    %v732 = vld [vmem:[#allocation8 + $0x8] sm:$0xff]
    %v733 = vld [vmem:[#allocation8 + $0x10] sm:$0xff]
    %v734 = vld [vmem:[#allocation8 + $0x18] sm:$0xff]
    %v735 = vld [vmem:[#allocation8 + $0x20] sm:$0xff]
    %v736 = vld [vmem:[#allocation8 + $0x28] sm:$0xff]
    %v737 = vld [vmem:[#allocation8 + $0x30] sm:$0xff]
    %v738 = vld [vmem:[#allocation8 + $0x38] sm:$0xff]
    %v739 = vld [vmem:[#allocation8 + $0x40] sm:$0xff]
    %v740 = vld [vmem:[#allocation8 + $0x48] sm:$0xff]
    %v741 = vld [vmem:[#allocation8 + $0x50] sm:$0xff]
    %v742 = vld [vmem:[#allocation8 + $0x58] sm:$0xff]
    %v743 = vld [vmem:[#allocation8 + $0x60] sm:$0xff]
    %v744 = vld [vmem:[#allocation8 + $0x68] sm:$0xff]
    %v745 = vld [vmem:[#allocation8 + $0x70] sm:$0xff]
    %v746 = vld [vmem:[#allocation8 + $0x78] sm:$0xff]
    %v747 = vld [vmem:[#allocation8 + $0x80] sm:$0xff]
    %v748 = vld [vmem:[#allocation8 + $0x88] sm:$0xff]
    %v749 = vld [vmem:[#allocation8 + $0x90] sm:$0xff]
    %v750 = vld [vmem:[#allocation8 + $0x98] sm:$0xff]
    %v751 = vld [vmem:[#allocation8 + $0xa0] sm:$0xff]
    %v752 = vld [vmem:[#allocation8 + $0xa8] sm:$0xff]
    %v753 = vld [vmem:[#allocation8 + $0xb0] sm:$0xff]
    %v754 = vld [vmem:[#allocation8 + $0xb8] sm:$0xff]
    %v755 = vld [vmem:[#allocation8 + $0xc0] sm:$0xff]
    %v756 = vld [vmem:[#allocation8 + $0xc8] sm:$0xff]
    %v757 = vld [vmem:[#allocation8 + $0xd0] sm:$0xff]
    %v758 = vld [vmem:[#allocation8 + $0xd8] sm:$0xff]
    %v759 = vld [vmem:[#allocation8 + $0xe0] sm:$0xff]
    %v760 = vld [vmem:[#allocation8 + $0xe8] sm:$0xff]
    %v761 = vld [vmem:[#allocation8 + $0xf0] sm:$0xff]
    %v762 = vld [vmem:[#allocation8 + $0xf8] sm:$0xff]
    %v763 = vld [vmem:[#allocation8 + $0x100] sm:$0xff]
    %v764 = vld [vmem:[#allocation8 + $0x108] sm:$0xff]
    %v765 = vld [vmem:[#allocation8 + $0x110] sm:$0xff]
    %v766 = vld [vmem:[#allocation8 + $0x118] sm:$0xff]
    %v767 = vld [vmem:[#allocation8 + $0x120] sm:$0xff]
    %v768 = vld [vmem:[#allocation8 + $0x128] sm:$0xff]
    %v769 = vld [vmem:[#allocation8 + $0x130] sm:$0xff]
    %v770 = vld [vmem:[#allocation8 + $0x138] sm:$0xff]
    %v771 = vld [vmem:[#allocation8 + $0x140] sm:$0xff]
    %v772 = vld [vmem:[#allocation8 + $0x148] sm:$0xff]
    %v773 = vld [vmem:[#allocation8 + $0x150] sm:$0xff]
    %v774 = vld [vmem:[#allocation8 + $0x158] sm:$0xff]
    %v775 = vld [vmem:[#allocation8 + $0x160] sm:$0xff]
    %v776 = vld [vmem:[#allocation8 + $0x168] sm:$0xff]
    %v777 = vld [vmem:[#allocation8 + $0x170] sm:$0xff]
    %v778 = vld [vmem:[#allocation8 + $0x178] sm:$0xff]
    %v779 = vld [vmem:[#allocation8 + $0x180] sm:$0xff]
    %v780 = vld [vmem:[#allocation8 + $0x188] sm:$0xff]
    %v781 = vld [vmem:[#allocation8 + $0x190] sm:$0xff]
    %v782 = vld [vmem:[#allocation8 + $0x198] sm:$0xff]
    %v783 = vld [vmem:[#allocation8 + $0x1a0] sm:$0xff]
    %v784 = vld [vmem:[#allocation8 + $0x1a8] sm:$0xff]
    %v785 = vld [vmem:[#allocation8 + $0x1b0] sm:$0xff]
    %v786 = vld [vmem:[#allocation8 + $0x1b8] sm:$0xff]
    %v787 = vld [vmem:[#allocation8 + $0x1c0] sm:$0xff]
    %v788 = vld [vmem:[#allocation8 + $0x1c8] sm:$0xff]
    %v789 = vld [vmem:[#allocation8 + $0x1d0] sm:$0xff]
    %v790 = vld [vmem:[#allocation8 + $0x1d8] sm:$0xff]
    %v791 = vld [vmem:[#allocation8 + $0x1e0] sm:$0xff]
    %v792 = vld [vmem:[#allocation8 + $0x1e8] sm:$0xff]
    %v793 = vld [vmem:[#allocation8 + $0x1f0] sm:$0xff]
    %v794 = vld [vmem:[#allocation8 + $0x1f8] sm:$0xff]
    %v795 = vld [vmem:[#allocation8 + $0x200] sm:$0xff]
    %v796 = vld [vmem:[#allocation8 + $0x208] sm:$0xff]
    %v797 = vld [vmem:[#allocation8 + $0x210] sm:$0xff]
    %v798 = vld [vmem:[#allocation8 + $0x218] sm:$0xff]
    %v799 = vld [vmem:[#allocation8 + $0x220] sm:$0xff]
    %v800 = vld [vmem:[#allocation8 + $0x228] sm:$0xff]
    %v801 = vld [vmem:[#allocation8 + $0x230] sm:$0xff]
    %v802 = vld [vmem:[#allocation8 + $0x238] sm:$0xff]
    %v803 = vld [vmem:[#allocation8 + $0x240] sm:$0xff]
    %v804 = vld [vmem:[#allocation8 + $0x248] sm:$0xff]
    %v805 = vld [vmem:[#allocation8 + $0x250] sm:$0xff]
    %v806 = vld [vmem:[#allocation8 + $0x258] sm:$0xff]
    %v807 = vld [vmem:[#allocation8 + $0x260] sm:$0xff]
    %v808 = vld [vmem:[#allocation8 + $0x268] sm:$0xff]
    %v809 = vld [vmem:[#allocation8 + $0x270] sm:$0xff]
    %v810 = vld [vmem:[#allocation8 + $0x278] sm:$0xff]
    %v811 = vld [vmem:[#allocation8 + $0x280] sm:$0xff]
    %v812 = vld [vmem:[#allocation8 + $0x288] sm:$0xff]
    %v813 = vld [vmem:[#allocation8 + $0x290] sm:$0xff]
    %v814 = vld [vmem:[#allocation8 + $0x298] sm:$0xff]
    %v815 = vld [vmem:[#allocation8 + $0x2a0] sm:$0xff]
    %v816 = vld [vmem:[#allocation8 + $0x2a8] sm:$0xff]
    %v817 = vld [vmem:[#allocation8 + $0x2b0] sm:$0xff]
    %v818 = vld [vmem:[#allocation8 + $0x2b8] sm:$0xff]
    %v819 = vld [vmem:[#allocation8 + $0x2c0] sm:$0xff]
    %v820 = vld [vmem:[#allocation8 + $0x2c8] sm:$0xff]
    %v821 = vld [vmem:[#allocation8 + $0x2d0] sm:$0xff]
    %v822 = vld [vmem:[#allocation8 + $0x2d8] sm:$0xff]
    %v823 = vld [vmem:[#allocation8 + $0x2e0] sm:$0xff]
    %v824 = vld [vmem:[#allocation8 + $0x2e8] sm:$0xff]
    %v825 = vld [vmem:[#allocation8 + $0x2f0] sm:$0xff]
    %v826 = vld [vmem:[#allocation8 + $0x2f8] sm:$0xff]
    %827 = vmatpush.msra.mxu0 %v776
    %828 = vmatpush.msra.mxu0 %v773
    %829 = vmatpush.msra.mxu0 %v770
    %830 = vmatpush.msra.mxu0 %v767
    %831 = vmatpush.msra.mxu0 %v764
    %832 = vmatpush.msra.mxu0 %v761
    %833 = vmatpush.msra.mxu0 %v758
    %834 = vmatpush.msra.mxu0 %v755
    %835 = vmatpush.msra.mxu0 %v752
    %836 = vmatpush.msra.mxu0 %v749
    %837 = vmatpush.msra.mxu0 %v746
    %838 = vmatpush.msra.mxu0 %v743
    %839 = vmatpush.msra.mxu0 %v740
    %840 = vmatpush.msra.mxu0 %v737
    %841 = vmatpush.msra.mxu0 %v734
    %842 = vmatpush.msra.mxu0 %v731
    %843 = vmatmul.f32.gmra.mxu0 %v729
    %v844 = vpop.f32.mrf.mxu0
    %v845 = vadd.f32 0.0, %v844
    %846 = vdwg.mxu0
    %847 = vmatpush.msra.mxu0 %v777
    %848 = vmatpush.msra.mxu0 %v774
    %849 = vmatpush.msra.mxu0 %v771
    %850 = vmatpush.msra.mxu0 %v768
    %851 = vmatpush.msra.mxu0 %v765
    %852 = vmatpush.msra.mxu0 %v762
    %853 = vmatpush.msra.mxu0 %v759
    %854 = vmatpush.msra.mxu0 %v756
    %855 = vmatpush.msra.mxu0 %v753
    %856 = vmatpush.msra.mxu0 %v750
    %857 = vmatpush.msra.mxu0 %v747
    %858 = vmatpush.msra.mxu0 %v744
    %859 = vmatpush.msra.mxu0 %v741
    %860 = vmatpush.msra.mxu0 %v738
    %861 = vmatpush.msra.mxu0 %v735
    %862 = vmatpush.msra.mxu0 %v732
    %863 = vmatmul.f32.gmra.mxu0 %v729
    %v864 = vpop.f32.mrf.mxu0
    %v865 = vadd.f32 0.0, %v864
    %866 = vdwg.mxu0
    %867 = vmatpush.msra.mxu0 %v778
    %868 = vmatpush.msra.mxu0 %v775
    %869 = vmatpush.msra.mxu0 %v772
    %870 = vmatpush.msra.mxu0 %v769
    %871 = vmatpush.msra.mxu0 %v766
    %872 = vmatpush.msra.mxu0 %v763
    %873 = vmatpush.msra.mxu0 %v760
    %874 = vmatpush.msra.mxu0 %v757
    %875 = vmatpush.msra.mxu0 %v754
    %876 = vmatpush.msra.mxu0 %v751
    %877 = vmatpush.msra.mxu0 %v748
    %878 = vmatpush.msra.mxu0 %v745
    %879 = vmatpush.msra.mxu0 %v742
    %880 = vmatpush.msra.mxu0 %v739
    %881 = vmatpush.msra.mxu0 %v736
    %882 = vmatpush.msra.mxu0 %v733
    %883 = vmatmul.f32.gmra.mxu0 %v729
    %v884 = vpop.f32.mrf.mxu0
    %v885 = vadd.f32 0.0, %v884
    %886 = vdwg.mxu0
    %887 = vmatpush.msra.mxu0 %v824
    %888 = vmatpush.msra.mxu0 %v821
    %889 = vmatpush.msra.mxu0 %v818
    %890 = vmatpush.msra.mxu0 %v815
    %891 = vmatpush.msra.mxu0 %v812
    %892 = vmatpush.msra.mxu0 %v809
    %893 = vmatpush.msra.mxu0 %v806
    %894 = vmatpush.msra.mxu0 %v803
    %895 = vmatpush.msra.mxu0 %v800
    %896 = vmatpush.msra.mxu0 %v797
    %897 = vmatpush.msra.mxu0 %v794
    %898 = vmatpush.msra.mxu0 %v791
    %899 = vmatpush.msra.mxu0 %v788
    %900 = vmatpush.msra.mxu0 %v785
    %901 = vmatpush.msra.mxu0 %v782
    %902 = vmatpush.msra.mxu0 %v779
    %903 = vmatmul.f32.gmra.mxu0 %v93
    %v904 = vpop.f32.mrf.mxu0
    %v905 = vadd.f32 0.0, %v904
    %906 = vdwg.mxu0
    %907 = vmatpush.msra.mxu0 %v825
    %908 = vmatpush.msra.mxu0 %v822
    %909 = vmatpush.msra.mxu0 %v819
    %910 = vmatpush.msra.mxu0 %v816
    %911 = vmatpush.msra.mxu0 %v813
    %912 = vmatpush.msra.mxu0 %v810
    %913 = vmatpush.msra.mxu0 %v807
    %914 = vmatpush.msra.mxu0 %v804
    %915 = vmatpush.msra.mxu0 %v801
    %916 = vmatpush.msra.mxu0 %v798
    %917 = vmatpush.msra.mxu0 %v795
    %918 = vmatpush.msra.mxu0 %v792
    %919 = vmatpush.msra.mxu0 %v789
    %920 = vmatpush.msra.mxu0 %v786
    %921 = vmatpush.msra.mxu0 %v783
    %922 = vmatpush.msra.mxu0 %v780
    %923 = vmatmul.f32.gmra.mxu0 %v93
    %v924 = vpop.f32.mrf.mxu0
    %v925 = vadd.f32 0.0, %v924
    %926 = vdwg.mxu0
    %927 = vmatpush.msra.mxu0 %v826
    %928 = vmatpush.msra.mxu0 %v823
    %929 = vmatpush.msra.mxu0 %v820
    %930 = vmatpush.msra.mxu0 %v817
    %931 = vmatpush.msra.mxu0 %v814
    %932 = vmatpush.msra.mxu0 %v811
    %933 = vmatpush.msra.mxu0 %v808
    %934 = vmatpush.msra.mxu0 %v805
    %935 = vmatpush.msra.mxu0 %v802
    %936 = vmatpush.msra.mxu0 %v799
    %937 = vmatpush.msra.mxu0 %v796
    %938 = vmatpush.msra.mxu0 %v793
    %939 = vmatpush.msra.mxu0 %v790
    %940 = vmatpush.msra.mxu0 %v787
    %941 = vmatpush.msra.mxu0 %v784
    %942 = vmatpush.msra.mxu0 %v781
    %943 = vmatmul.f32.gmra.mxu0 %v93
    %v944 = vpop.f32.mrf.mxu0
    %v945 = vadd.f32 0.0, %v944
    %946 = vdwg.mxu0
    %v947 = vperm.slane %v135, 1
    %v948 = vadd.f32 %v845, %v947
    %v949 = vadd.f32 %v948, %v905
    %v950 = vperm.slane %v135, 4
    %v951 = vadd.f32 %v949, %v950
    %v952 = vxor.u32 %v951, 2147483648
    %v953 = vmul.f32 %v952, 1.442695
    %v954 = vpow.pop %v953
    %v955 = vadd.f32 %v954, 1.0
    %v956 = vrcp.pop %v955
    %v957 = vmul.f32 %v955, %v956
    %v958 = vsub.f32 1.0, %v957
    %v959 = vmul.f32 %v956, %v958
    %v960 = vadd.f32 %v956, %v959
    %vm961 = vweird.f32 %v955
    %vm962 = vweird.f32 %v956
    %vm963 = vmor %vm961, %vm962
    %v964 = vsel %vm963, %v956, %v960
    %v965 = vand.u32 2147483647, %v955
    %vm966 = vcmp.eq.f32.partialorder %v965, 8.507059e+37
    %v967 = vand.u32 %v955, 2147483648
    %v968 = vor.u32 1.1754944e-38, %v967
    %v969 = vsel %vm966, %v968, %v964
    %v970 = vmul.f32 1.0, %v969
    %v971 = vperm.slane %v135, 2
    %v972 = vadd.f32 %v865, %v971
    %v973 = vadd.f32 %v972, %v925
    %v974 = vperm.slane %v135, 5
    %v975 = vadd.f32 %v973, %v974
    %v976 = vxor.u32 %v975, 2147483648
    %v977 = vmul.f32 %v976, 1.442695
    %v978 = vpow.pop %v977
    %v979 = vadd.f32 %v978, 1.0
    %v980 = vrcp.pop %v979
    %v981 = vmul.f32 %v979, %v980
    %v982 = vsub.f32 1.0, %v981
    %v983 = vmul.f32 %v980, %v982
    %v984 = vadd.f32 %v980, %v983
    %vm985 = vweird.f32 %v979
    %vm986 = vweird.f32 %v980
    %vm987 = vmor %vm985, %vm986
    %v988 = vsel %vm987, %v980, %v984
    %v989 = vand.u32 2147483647, %v979
    %vm990 = vcmp.eq.f32.partialorder %v989, 8.507059e+37
    %v991 = vand.u32 %v979, 2147483648
    %v992 = vor.u32 1.1754944e-38, %v991
    %v993 = vsel %vm990, %v992, %v988
    %v994 = vmul.f32 1.0, %v993
    %v995 = vperm.slane %v135, 3
    %v996 = vadd.f32 %v885, %v995
    %v997 = vperm.slane %v135, 6
    %v998 = vadd.f32 %v945, %v997
    %v999 = vmul.f32 %v970, %v998
    %v1000 = vadd.f32 %v996, %v999
    %v1001 = vtanh.pop %v1000
    %v1002 = vsub.f32 1.0, %v994
    %v1003 = vmul.f32 %v1002, %v1001
    %v1004 = vmul.f32 %v994, %v93
    %v1005 = vadd.f32 %v1003, %v1004
    %v1006 = vld [vmem:[#allocation9 + $0x80] sm:$0xff]
    %v1007 = vld [vmem:[#allocation9 + $0x88] sm:$0xff]
    %v1008 = vld [vmem:[#allocation9 + $0x90] sm:$0xff]
    %v1009 = vld [vmem:[#allocation9 + $0x98] sm:$0xff]
    %v1010 = vld [vmem:[#allocation9 + $0xa0] sm:$0xff]
    %v1011 = vld [vmem:[#allocation9 + $0xa8] sm:$0xff]
    %v1012 = vld [vmem:[#allocation9 + $0xb0] sm:$0xff]
    %v1013 = vld [vmem:[#allocation9 + $0xb8] sm:$0xff]
    %v1014 = vld [vmem:[#allocation9 + $0xc0] sm:$0xff]
    %v1015 = vld [vmem:[#allocation9 + $0xc8] sm:$0xff]
    %v1016 = vld [vmem:[#allocation9 + $0xd0] sm:$0xff]
    %v1017 = vld [vmem:[#allocation9 + $0xd8] sm:$0xff]
    %v1018 = vld [vmem:[#allocation9 + $0xe0] sm:$0xff]
    %v1019 = vld [vmem:[#allocation9 + $0xe8] sm:$0xff]
    %v1020 = vld [vmem:[#allocation9 + $0xf0] sm:$0xff]
    %v1021 = vld [vmem:[#allocation9 + $0xf8] sm:$0xff]
    %v1022 = vperm.slane %v135, 7
    %1023 = vmatpush.msra.mxu0 %v1021
    %1024 = vmatpush.msra.mxu0 %v1020
    %1025 = vmatpush.msra.mxu0 %v1019
    %1026 = vmatpush.msra.mxu0 %v1018
    %1027 = vmatpush.msra.mxu0 %v1017
    %1028 = vmatpush.msra.mxu0 %v1016
    %1029 = vmatpush.msra.mxu0 %v1015
    %1030 = vmatpush.msra.mxu0 %v1014
    %1031 = vmatpush.msra.mxu0 %v1013
    %1032 = vmatpush.msra.mxu0 %v1012
    %1033 = vmatpush.msra.mxu0 %v1011
    %1034 = vmatpush.msra.mxu0 %v1010
    %1035 = vmatpush.msra.mxu0 %v1009
    %1036 = vmatpush.msra.mxu0 %v1008
    %1037 = vmatpush.msra.mxu0 %v1007
    %1038 = vmatpush.msra.mxu0 %v1006
    %1039 = vmatmul.f32.gmra.mxu0 %v1005
    %v1040 = vpop.f32.mrf.mxu0
    %v1041 = vadd.f32 %v1022, %v1040
    %1042 = vdwg.mxu0
    %1043 = vst [vmem:[#allocation2] sm:$0xff] %v1005
    %v1044 = vperm.slane %v602, %v96
    %v1045 = vperm.slane %v607, %v96
    %v1046 = vperm.slane %v612, %v96
    %v1047 = vperm.slane %v617, %v96
    %v1048 = vperm.slane %v622, %v96
    %v1049 = vperm.slane %v627, %v96
    %v1050 = vperm.slane %v632, %v96
    %v1051 = vperm.slane %v637, %v96
    %v1052 = vsel %vm351, %v1045, %v1044
    %v1053 = vsel %vm353, %v1046, %v1052
    %v1054 = vsel %vm355, %v1047, %v1053
    %v1055 = vsel %vm357, %v1048, %v1054
    %v1056 = vsel %vm359, %v1049, %v1055
    %v1057 = vsel %vm361, %v1050, %v1056
    %v1058 = vsel %vm363, %v1051, %v1057
    %v1060 = vsel %vm366, %v1058, 0.0
    %1061 = vst [vmem:[#allocation11] sm:$0xff] %v1041
    %1062 = vst [vmem:[#allocation11 + $0x8] sm:$0xff] %v1005
    %1063 = vst [vmem:[#allocation11 + $0x10] sm:$0xff] %v1060
    // Predicated region
    $region46: #{tpu_custom_call.1} parent=1 // pred_check
      _
    $region47: #{tpu_custom_call.1} parent=1 // pred_check_branch
      %1065 = sbr.rel (0) target = $region49
    $region48: #{tpu_custom_call.1} parent=1 // pred_region
      %1067 = vsyncadd [#allocation5], 0
      %s1069 = sshll.u32 [#allocation11], 4
      %s1070 = int_to_ptr.vmem [resolvable:$true] %s1069
      %s1071 = sshll.u32 %s6, 4
      %s1072 = int_to_ptr.hbm [resolvable:$true] %s1071
      %1074 = dma.vmem_to_hbm [thread:$0]  %s1070, 384, %s1072, [#allocation5]
    $region49: #{tpu_custom_call.1} parent=1 // pred_fallthru
      _
    // Predicated region
    $region50: #{tpu_custom_call.1} parent=1 // pred_check
      _
    $region51: #{tpu_custom_call.1} parent=1 // pred_check_branch
      %1076 = sbr.rel (0) target = $region53
    $region52: #{tpu_custom_call.1} parent=1 // pred_region
      %1078 = dma.done [#allocation5], 384
    $region53: #{tpu_custom_call.1} parent=1 // pred_fallthru
      _
    %1079 = vsyncpa [#allocation4], 1
    %1080 = vsyncpa [#allocation7], 1
    %1081 = vsyncpa [#allocation10], 1
    %1082 = vsyncpa [#allocation5], 1

</llo_original>
